<compile_context>
chip_gen: v7x
topology: tpu7x:2x2x1
jax: 0.10.0
libtpu: 0.0.40
codegen_flags: <defaults>
</compile_context>

<pallas_src>
import math

import jax
import jax.numpy as jnp
from jax.experimental import pallas as pl
from jax.experimental.pallas import tpu as pltpu

_LANE = 128
_MIB = 1024 * 1024


def make_pe_buffer(d_model: int, max_len: int = 5000, dtype=jnp.float32):
    """Deterministic positional-encoding buffer, identical math to the module."""
    position = jnp.arange(0, max_len, dtype=jnp.float32)[:, None]            # (max_len, 1)
    div_term = jnp.exp(
        jnp.arange(0, d_model, 2, dtype=jnp.float32) * -(math.log(10000.0) / d_model)
    )                                                                         # (ceil(D/2),)
    angles = position * div_term                                              # (max_len, ceil(D/2))
    pe = jnp.zeros((max_len, d_model), dtype=dtype)
    pe = pe.at[:, 0::2].set(jnp.sin(angles).astype(dtype))
    pe = pe.at[:, 1::2].set(jnp.cos(angles)[:, : d_model // 2].astype(dtype))
    return pe                                                                 # (max_len, d_model)


def _add_pe_kernel(x_ref, pe_ref, o_ref):
    # x_ref : (tB, tL) block of the flattened input
    # pe_ref: (1,  tL) matching slice of the flattened PE table (broadcast over tB)
    o_ref[...] = x_ref[...] + pe_ref[...]


def _chip_block_target() -> int:
    """Per-generation x-block byte target (amortize ~0.35 us/step vs HBM BW)."""
    try:
        kind = jax.devices()[0].device_kind.lower()
    except Exception:
        kind = ""
    if "v7" in kind:
        return 6 * _MIB     # ~3.2 TB/s per TC: 2 MiB blocks leave 25-30% step overhead
    if "v6" in kind:
        return 4 * _MIB     # ~1.4 TB/s
    return 2 * _MIB         # v5e (~0.8 TB/s) / unknown: per-step overhead already <10%


def _sublane_granule(dtype) -> int:
    """Sublane packing granule in rows: 8 (f32), 16 (bf16), 32 (int8/fp8)."""
    itemsize = jnp.dtype(dtype).itemsize
    return max(8, 32 // itemsize)


def _padded_rows(h: int, g: int) -> int:
    return -(-h // g) * g


def _choose_tiles(B: int, L: int, dtype, block_target_bytes: int):
    """Pick (tB, tL): (8,128)-legal blocks, budgeted with the PADDED height."""
    itemsize = jnp.dtype(dtype).itemsize
    g = _sublane_granule(dtype)
    row_bytes = L * itemsize

    # Case A: full-L blocks (one contiguous DMA per block, pe fetched once).
    if _padded_rows(min(B, g), g) * row_bytes <= block_target_bytes:
        if B <= g:
            return B, L                                        # full-extent batch dim
        if _padded_rows(B, g) * row_bytes <= block_target_bytes:
            return B, L                                        # whole array in one block
        rows_fit = (block_target_bytes // row_bytes // g) * g  # multiple of granule
        return max(g, rows_fit), L

    # Case B: tile L too. Batch tile = dtype granule -> full unmasked vst,
    # no relayout for 16-/8-bit inputs.
    tB = B if B <= g else g
    padded_tb = _padded_rows(tB, g)
    lane_budget = block_target_bytes // (padded_tb * itemsize)
    tL = max(_LANE, (lane_budget // _LANE) * _LANE)            # lane-dense multiple of 128
    tL = min(tL, L)
    return tB, tL


def positional_encoding(x: jax.Array, pe: jax.Array, *, min_pallas_bytes: int = _MIB):
    """x: (B, S, D), pe: (max_len, D). Returns x + pe[:S] broadcast over batch."""
    B, S, D = x.shape
    L = S * D
    itemsize = jnp.dtype(x.dtype).itemsize

    # Setup glue (outside the hot add): slice the table; cast only if needed
    # (the buffer should already be built in the model dtype).
    pe_s = pe[:S]
    if pe_s.dtype != x.dtype:
        pe_s = pe_s.astype(x.dtype)

    # Tiny-input fast path: pallas_call fixed cost dwarfs the work; let XLA fuse.
    if x.size * itemsize < min_pallas_bytes:
        return x + pe_s[None, :, :]

    pe_flat = pe_s.reshape(1, L)       # (1, S*D)
    x2 = x.reshape(B, L)               # (B, S*D)  lane-dense layout

    block_target = _chip_block_target()
    tB, tL = _choose_tiles(B, L, x.dtype, block_target)
    g = _sublane_granule(x.dtype)
    padded_tb = _padded_rows(tB, g)

    nB = pl.cdiv(B, tB)
    nL = pl.cdiv(L, tL)

    # VMEM budget with padded block heights:
    #   x + out : 2 arrays x 2 double-buffers x padded block
    #   pe      : (1, tL) block pads to g rows; x 2 buffers
    block_bytes = padded_tb * tL * itemsize
    pe_block_bytes = g * tL * itemsize
    needed = 4 * block_bytes + 2 * pe_block_bytes
    vmem_limit = int(min(max(32 * _MIB, needed + 4 * _MIB), 48 * _MIB))

    cparams = pltpu.CompilerParams(
        dimension_semantics=("parallel",) * (1 if nL == 1 else 2),
        vmem_limit_bytes=vmem_limit,
    )

    if nL == 1:
        # Full-L blocks: 1-D grid over batch blocks. pe's block index is
        # constant -> DMA'd once and kept resident; megacore shards nB.
        out2 = pl.pallas_call(
            _add_pe_kernel,
            out_shape=jax.ShapeDtypeStruct((B, L), x.dtype),
            grid=(nB,),
            in_specs=[
                pl.BlockSpec((tB, L), lambda b: (b, 0)),   # x block
                pl.BlockSpec((1, L), lambda b: (0, 0)),    # PE (resident)
            ],
            out_specs=pl.BlockSpec((tB, L), lambda b: (b, 0)),
            compiler_params=cparams,
        )(x2, pe_flat)
    else:
        # L axis first (>= 2 steps) so the v7x megacore split has real work;
        # batch innermost so pe's block index is constant across the inner
        # loop and its tile stays resident instead of being re-fetched.
        out2 = pl.pallas_call(
            _add_pe_kernel,
            out_shape=jax.ShapeDtypeStruct((B, L), x.dtype),
            grid=(nL, nB),
            in_specs=[
                pl.BlockSpec((tB, tL), lambda l, b: (b, l)),   # x tile
                pl.BlockSpec((1, tL), lambda l, b: (0, l)),    # matching PE tile
            ],
            out_specs=pl.BlockSpec((tB, tL), lambda l, b: (b, l)),
            compiler_params=cparams,
        )(x2, pe_flat)

    return out2.reshape(B, S, D)


if __name__ == "__main__":
    # Small shapes consistent with the module: batch=2, seq=8, d_model=32
    B, S, D = 2, 8, 32
    MAX_LEN = 5000

    key = jax.random.PRNGKey(0)
    x = jax.random.normal(key, (B, S, D), dtype=jnp.float32)

    # Build the buffer once, directly in the model dtype (no per-call astype).
    pe = make_pe_buffer(D, MAX_LEN, dtype=jnp.float32)

    # Pure-JAX reference (same semantics as the PyTorch forward).
    ref = x + pe[None, :S, :]

    # Force the Pallas path (default dispatch would take the tiny-input XLA
    # fast path for a shape this small) so the kernel compiles and runs.
    out = positional_encoding(x, pe, min_pallas_bytes=0)
    out = jax.block_until_ready(out)
    assert out.shape == (B, S, D)
    assert jnp.allclose(out, ref, atol=1e-6, rtol=1e-6)

    # Default dispatch (fast path for tiny inputs) must agree too.
    out_fast = jax.block_until_ready(positional_encoding(x, pe))
    assert jnp.allclose(out_fast, ref, atol=1e-6, rtol=1e-6)

    print("KERNEL_OK")
</pallas_src>

<mosaic_0001>
module attributes {stable_mosaic.version = 11 : i64} {
  func.func @_add_pe_kernel(%arg0: i32, %arg1: memref<2x256xf32, #tpu.memory_space<vmem>>, %arg2: memref<1x256xf32, #tpu.memory_space<vmem>>, %arg3: memref<2x256xf32, #tpu.memory_space<vmem>>) attributes {dimension_semantics = [#tpu.dimension_semantics<parallel>], iteration_bounds = array<i64: 1>, scalar_prefetch = 0 : i64, scratch_operands = 0 : i64, tpu.core_type = #tpu.core_type<tc>, window_params = [{transform_indices = @transform_0, window_bounds = array<i64: 2, 256>}, {pipeline_mode = #tpu.pipeline_mode<synchronous>, transform_indices = @transform_1, window_bounds = array<i64: 1, 256>}, {transform_indices = @transform_2, window_bounds = array<i64: 2, 256>}]} {
    %c0 = arith.constant 0 : index
    %c0_0 = arith.constant 0 : index
    %0 = vector.load %arg1[%c0, %c0_0] : memref<2x256xf32, #tpu.memory_space<vmem>>, vector<2x256xf32>
    %c0_1 = arith.constant 0 : index
    %c0_2 = arith.constant 0 : index
    %1 = vector.load %arg2[%c0_1, %c0_2] : memref<1x256xf32, #tpu.memory_space<vmem>>, vector<1x256xf32>
    %2 = vector.broadcast %1 : vector<1x256xf32> to vector<2x256xf32>
    %3 = arith.addf %0, %2 : vector<2x256xf32>
    %c0_3 = arith.constant 0 : index
    %c0_4 = arith.constant 0 : index
    %4 = vector.load %arg3[%c0_3, %c0_4] : memref<2x256xf32, #tpu.memory_space<vmem>>, vector<2x256xf32>
    tpu.vector_store %arg3[%c0_3, %c0_4], %3 {strides = array<i32>} : memref<2x256xf32, #tpu.memory_space<vmem>>, vector<2x256xf32>,
    return
  }
  func.func @transform_0(%arg0: i32) -> (i32, i32) {
    %c0_i32 = arith.constant 0 : i32
    %c0_i32_0 = arith.constant 0 : i32
    return %arg0, %c0_i32 : i32, i32
  }
  func.func @transform_1(%arg0: i32) -> (i32, i32) {
    %c0_i32 = arith.constant 0 : i32
    %c0_i32_0 = arith.constant 0 : i32
    %c0_i32_1 = arith.constant 0 : i32
    return %c0_i32, %c0_i32_0 : i32, i32
  }
  func.func @transform_2(%arg0: i32) -> (i32, i32) {
    %c0_i32 = arith.constant 0 : i32
    %c0_i32_0 = arith.constant 0 : i32
    return %arg0, %c0_i32 : i32, i32
  }
}

</mosaic_0001>

<llo_original>
// kernel: tpu_custom_call.1
$region0: #{tpu_custom_call.1}
  #allocation0 [shape = 'u32[]', space=smem, size = 0x4, offset = 0x4, fixed_abs, tag = 'smem constant byte address 0x4 - core index']
  #allocation1 [shape = 'u32[144,128]{1,0:T(1,128)}', space=vmem, size = 0x12000, scoped, tag = 'internal scratch']
  %s0 = inlined_call_operand.hbm [shape: f32[2,256], index: 0, kind: input, shape index: {}]
  %s1 = inlined_call_operand.vmem [shape: f32[1,256], index: 1, kind: input, shape index: {}]
  %s2 = inlined_call_operand.hbm [shape: f32[2,256], index: 2, kind: output, shape index: {}]
  %s3 = sld [smem:[#allocation0]]
  $region22: #{tpu_custom_call.1} parent=0
    _
  %s5 = ssub.s32 1, %s3
  %s6 = scalar_select 0, %s5, %s3
  $region1: #{tpu_custom_call.1} parent=0
    #allocation2 [shape = 'u8[2048]{0}', space=vmem, size = 0x800, scoped, tag = 'input window, operand 0, single buffered']
    #allocation3 [shape = 's32[1]{0}', space=sflag, size = 0x4, scoped, tag = 'scoped memory for tpu_custom_call.1']
    #allocation4 [shape = 's32[1]{0}', space=sflag, size = 0x4, scoped, tag = 'scoped memory for tpu_custom_call.1']
    #allocation5 [shape = 'u8[2048]{0}', space=vmem, size = 0x800, scoped, tag = 'output window, operand 0, single buffered']
    %7 = vsyncpa [#allocation3], 0
    %8 = vsyncpa [#allocation4], 0
    // Predicated region
    $region2: #{tpu_custom_call.1} parent=1 // pred_check
      _
    $region3: #{tpu_custom_call.1} parent=1 // pred_check_branch
      %10 = sbr.rel (0) target = $region5
    $region4: #{tpu_custom_call.1} parent=1 // pred_region
      %s12 = ssub.s32 64, 64
      %13 = vsyncadd [#allocation3], %s12
      %s15 = sshll.u32 [#allocation2], 4
      %s16 = int_to_ptr.vmem [resolvable:$true] %s15
      %18 = dma.hbm_to_vmem [thread:$0]  %s0, 64, %s16, [#allocation3]
    $region5: #{tpu_custom_call.1} parent=1 // pred_fallthru
      _
    // Predicated region
    $region6: #{tpu_custom_call.1} parent=1 // pred_check
      _
    $region7: #{tpu_custom_call.1} parent=1 // pred_check_branch
      %20 = sbr.rel (0) target = $region9
    $region8: #{tpu_custom_call.1} parent=1 // pred_region
      _
    $region9: #{tpu_custom_call.1} parent=1 // pred_fallthru
      _
    // Predicated region
    $region10: #{tpu_custom_call.1} parent=1 // pred_check
      _
    $region11: #{tpu_custom_call.1} parent=1 // pred_check_branch
      %22 = sbr.rel (0) target = $region13
    $region12: #{tpu_custom_call.1} parent=1 // pred_region
      %23 = dma.done [#allocation3], 64
    $region13: #{tpu_custom_call.1} parent=1 // pred_fallthru
      _
    %v24 = vld [vmem:[#allocation2] sm:$0xf]
    %v25 = vld [vmem:[%s1] sm:$0x3]
    %v27 = vlaneseq
    %v28 = vshrl.u32 %v27, 7
    %v29 = vsub.s32 0, %v28
    %v30 = vrot.slane %v25, %v29
    %v31 = vlaneseq
    %v32 = vshrl.u32 %v31, 7
    %v33 = vsub.s32 1, %v32
    %v34 = vrot.slane %v25, %v33
    %v35 = vcombine.low %v30, %v34
    %v37 = vunpack.c.l.s4 1983009808
    %v38 = vunpack.c.0.s8 %v37
    %v39 = vlaneseq
    %v40 = vshrl.u32 %v39, 7
    %v41 = vsub.s32 %v38, %v40
    %v42 = vrot.slane %v35, %v41
    %v44 = vadd.f32 %v24, %v42
    %45 = vst [vmem:[#allocation5] sm:$0xf] %v44
    // Predicated region
    $region14: #{tpu_custom_call.1} parent=1 // pred_check
      _
    $region15: #{tpu_custom_call.1} parent=1 // pred_check_branch
      %47 = sbr.rel (0) target = $region17
    $region16: #{tpu_custom_call.1} parent=1 // pred_region
      %s49 = ssub.s32 64, 64
      %50 = vsyncadd [#allocation4], %s49
      %s52 = sshll.u32 [#allocation5], 4
      %s53 = int_to_ptr.vmem [resolvable:$true] %s52
      %55 = dma.vmem_to_hbm [thread:$0]  %s53, 64, %s2, [#allocation4]
    $region17: #{tpu_custom_call.1} parent=1 // pred_fallthru
      _
    // Predicated region
    $region18: #{tpu_custom_call.1} parent=1 // pred_check
      _
    $region19: #{tpu_custom_call.1} parent=1 // pred_check_branch
      %57 = sbr.rel (0) target = $region21
    $region20: #{tpu_custom_call.1} parent=1 // pred_region
      %58 = dma.done [#allocation4], 64
    $region21: #{tpu_custom_call.1} parent=1 // pred_fallthru
      _
    %59 = vsyncpa [#allocation3], 1
    %60 = vsyncpa [#allocation4], 1

</llo_original>
